<compile_context>
chip_gen: v6e
topology: v6e:2x2x1
jax: 0.10.0
libtpu: 0.0.40
codegen_flags: <defaults>
</compile_context>

<pallas_src>
import functools
import math

import jax
import jax.numpy as jnp
from jax import lax
from jax.experimental import pallas as pl
from jax.experimental.pallas import tpu as pltpu

LANE = 128     # lane width: output channel dims are padded to a multiple of this
TM_MAX = 512   # max row tile for the GEMM kernel

# ConvTranspose2d(k=4, s=2, p=1) phase decomposition tables.
# For output parity p, the contributing taps are kernel rows _PHASE_KY[p] read from
# (1-padded) input row offsets _PHASE_OFFS[p].
_PHASE_OFFS = {0: (0, 1), 1: (1, 2)}
_PHASE_KY = {0: (3, 1), 1: (2, 0)}


def _round_up(x, m):
    return (x + m - 1) // m * m


# -----------------------------------------------------------------------------
# Pallas kernel 1: fused matmul + bias + optional ReLU (bf16 MXU, f32 accumulate).
# -----------------------------------------------------------------------------
def _gemm_bias_act_kernel(x_ref, w_ref, b_ref, o_ref, *, relu):
    acc = jnp.dot(x_ref[...], w_ref[...], preferred_element_type=jnp.float32)
    acc = acc + b_ref[...]
    if relu:
        acc = jnp.maximum(acc, 0.0)
    o_ref[...] = acc.astype(o_ref.dtype)


def gemm_bias_act(x, w, b, relu=False, out_dtype=jnp.float32):
    """x: (M, K) @ w: (K, Np) bf16 (Np % 128 == 0) + b: (1, Np) f32 -> (M, Np)."""
    M, K = x.shape
    Kw, Np = w.shape
    assert K == Kw and Np % LANE == 0
    x = x.astype(jnp.bfloat16)
    tm = min(TM_MAX, _round_up(M, 8))
    grid = pl.cdiv(M, tm)
    return pl.pallas_call(
        functools.partial(_gemm_bias_act_kernel, relu=relu),
        out_shape=jax.ShapeDtypeStruct((M, Np), out_dtype),
        grid_spec=pltpu.PrefetchScalarGridSpec(
            num_scalar_prefetch=0,
            grid=(grid,),
            in_specs=[
                pl.BlockSpec((tm, K), lambda i: (i, 0)),
                pl.BlockSpec((K, Np), lambda i: (0, 0)),    # resident weight
                pl.BlockSpec((1, Np), lambda i: (0, 0)),
            ],
            out_specs=pl.BlockSpec((tm, Np), lambda i: (i, 0)),
        ),
        compiler_params=pltpu.CompilerParams(dimension_semantics=("parallel",)),
    )(x, w, b)


# -----------------------------------------------------------------------------
# Conv / deconv built on the GEMM kernel (im2col glue in plain JAX, bf16 end-to-end).
# -----------------------------------------------------------------------------
def conv3x3_relu(x_nhwc, w_mat, b_mat, cout):
    """3x3 conv, stride 1, pad 1, + ReLU.  w_mat: (9*C, Np) bf16, b_mat: (1, Np) f32."""
    R, H, W, C = x_nhwc.shape
    xp = jnp.pad(x_nhwc.astype(jnp.bfloat16), ((0, 0), (1, 1), (1, 1), (0, 0)))
    patches = jnp.concatenate(
        [xp[:, dy:dy + H, dx:dx + W, :] for dy in range(3) for dx in range(3)],
        axis=-1)                                            # (R, H, W, 9*C) bf16
    y = gemm_bias_act(patches.reshape(R * H * W, 9 * C), w_mat, b_mat,
                      relu=True, out_dtype=jnp.bfloat16)
    return y[:, :cout].reshape(R, H, W, cout)


def deconv4x4_s2(x_nhwc, phase_w, b_mat, k):
    """ConvTranspose2d(k=4, s=2, p=1) as 4 per-phase GEMMs (no zero-dilated im2col)."""
    R, H, W, C = x_nhwc.shape
    xp = jnp.pad(x_nhwc.astype(jnp.bfloat16), ((0, 0), (1, 1), (1, 1), (0, 0)))
    ys = {}
    for (py, px), w_mat in phase_w.items():
        roffs, coffs = _PHASE_OFFS[py], _PHASE_OFFS[px]
        patches = jnp.concatenate(
            [xp[:, ro:ro + H, co:co + W, :] for ro in roffs for co in coffs],
            axis=-1)                                        # (R, H, W, 4*C) bf16
        y = gemm_bias_act(patches.reshape(R * H * W, 4 * C), w_mat, b_mat,
                          relu=False, out_dtype=jnp.bfloat16)
        ys[(py, px)] = y[:, :k].reshape(R, H, W, k)
    # Interleave the four phases: out[r, 2i+py, 2j+px, :] = ys[(py, px)][r, i, j, :].
    row0 = jnp.stack([ys[(0, 0)], ys[(0, 1)]], axis=3)      # (R, H, W, 2, K)
    row1 = jnp.stack([ys[(1, 0)], ys[(1, 1)]], axis=3)      # (R, H, W, 2, K)
    out = jnp.stack([row0, row1], axis=2)                   # (R, H, 2, W, 2, K)
    return out.reshape(R, 2 * H, 2 * W, k)


# -----------------------------------------------------------------------------
# Pallas kernel 2: fused 2x bilinear upsample  (out = U @ h @ U^T per (R*K) slab,
# intermediate lives in VMEM; no HBM round trip between the two passes).
# -----------------------------------------------------------------------------
def _bilinear_matrix(S):
    """(2S, S) interpolation matrix: F.interpolate scale=2, bilinear, align_corners=False."""
    out = 2 * S
    i = jnp.arange(out, dtype=jnp.float32)
    src = (i + 0.5) / 2.0 - 0.5
    j0 = jnp.floor(src)
    frac = src - j0
    j0c = jnp.clip(j0, 0, S - 1).astype(jnp.int32)
    j1c = jnp.clip(j0 + 1, 0, S - 1).astype(jnp.int32)
    U = jnp.zeros((out, S), jnp.float32)
    U = U.at[jnp.arange(out), j0c].add(1.0 - frac)
    U = U.at[jnp.arange(out), j1c].add(frac)
    return U


def _upsample_kernel(h_ref, u_ref, ut_ref, o_ref, *, tb):
    u = u_ref[...]                                           # (2S, S)  f32
    ut = ut_ref[...]                                         # (S, 2S)  f32
    for b in range(tb):                                      # static unroll
        hb = h_ref[b].astype(jnp.float32)                    # (S, S)
        t = jnp.dot(u, hb, preferred_element_type=jnp.float32)          # (2S, S)
        o_ref[b, :, :] = jnp.dot(t, ut, preferred_element_type=jnp.float32)


def upsample2x_bilinear(heat):
    """(R, K, S, S) -> (R, K, 2S, 2S) f32, fused in one Pallas kernel."""
    R, K, S, _ = heat.shape
    U = _bilinear_matrix(S)                                  # (2S, S)
    RK = R * K
    tb = min(8, RK)
    grid = pl.cdiv(RK, tb)
    out = pl.pallas_call(
        functools.partial(_upsample_kernel, tb=tb),
        out_shape=jax.ShapeDtypeStruct((RK, 2 * S, 2 * S), jnp.float32),
        grid_spec=pltpu.PrefetchScalarGridSpec(
            num_scalar_prefetch=0,
            grid=(grid,),
            in_specs=[
                pl.BlockSpec((tb, S, S), lambda i: (i, 0, 0)),
                pl.BlockSpec((2 * S, S), lambda i: (0, 0)),
                pl.BlockSpec((S, 2 * S), lambda i: (0, 0)),
            ],
            out_specs=pl.BlockSpec((tb, 2 * S, 2 * S), lambda i: (i, 0, 0)),
        ),
        compiler_params=pltpu.CompilerParams(dimension_semantics=("parallel",)),
    )(heat.reshape(RK, S, S), U, U.T)
    return out.reshape(R, K, 2 * S, 2 * S)


# -----------------------------------------------------------------------------
# Pallas kernel 3: heatmaps_to_keypoints post-processing, TR ROIs per grid step.
# TODO(synk): the per-ROI bicubic resize to (ceil(box_h), ceil(box_w)) has
# data-dependent output shapes and no clean Pallas equivalent; we take the argmax
# on the native heatmap grid and rescale coordinates by box size instead.
# -----------------------------------------------------------------------------
def _keypoints_kernel(boxes_ref, heat_ref, out_ref, *, hs, ws, k, np_out):
    heat = heat_ref[...].astype(jnp.float32)                 # (TR, K, L) with L = Hs*Ws
    m = jnp.max(heat, axis=-1, keepdims=True)                # (TR, K, 1)
    e = jnp.exp(heat - m)
    denom = jnp.sum(e, axis=-1)                              # (TR, K)
    score = pl.reciprocal(denom, approx=True)                # softmax prob at argmax (> 0)

    lin = lax.broadcasted_iota(jnp.int32, heat.shape, 2)
    masked = jnp.where(heat >= m, lin, hs * ws)
    pos = jnp.min(masked, axis=-1)                           # (TR, K), first max
    x_int = (pos % ws).astype(jnp.float32)
    y_int = (pos // ws).astype(jnp.float32)

    boxes = boxes_ref[...]                                   # (TR, 4) f32
    x1 = boxes[:, 0:1]
    y1 = boxes[:, 1:2]
    bw = jnp.maximum(boxes[:, 2:3] - x1, 1.0)
    bh = jnp.maximum(boxes[:, 3:4] - y1, 1.0)

    xs = (x_int + 0.5) * (bw * (1.0 / ws)) + x1              # (TR, K)
    ys = (y_int + 0.5) * (bh * (1.0 / hs)) + y1              # (TR, K)

    parts = [xs, ys, score]
    if np_out > 3 * k:                                       # lane-dense 128-wide slab
        parts.append(jnp.zeros((xs.shape[0], np_out - 3 * k), jnp.float32))
    out_ref[...] = jnp.concatenate(parts, axis=-1)


def heatmaps_to_keypoints_pallas(heatmaps, boxes):
    """heatmaps: (R, K, S, S) f32; boxes: (R, 4) f32 -> (R, K, 3) [x, y, score]."""
    R, K, Hs, Ws = heatmaps.shape
    L = Hs * Ws
    tr = min(8, R)
    grid = pl.cdiv(R, tr)
    r_pad = grid * tr
    np_out = _round_up(3 * K, LANE)

    heat_flat = heatmaps.reshape(R, K, L)
    boxes_pad = jnp.zeros((r_pad, 4), jnp.float32).at[:R].set(boxes.astype(jnp.float32))

    out = pl.pallas_call(
        functools.partial(_keypoints_kernel, hs=Hs, ws=Ws, k=K, np_out=np_out),
        out_shape=jax.ShapeDtypeStruct((r_pad, np_out), jnp.float32),
        grid_spec=pltpu.PrefetchScalarGridSpec(
            num_scalar_prefetch=0,
            grid=(grid,),
            in_specs=[
                pl.BlockSpec((tr, 4), lambda i: (i, 0)),          # boxes (tiny VMEM block)
                pl.BlockSpec((tr, K, L), lambda i: (i, 0, 0)),    # TR flattened heatmaps
            ],
            out_specs=pl.BlockSpec((tr, np_out), lambda i: (i, 0)),
        ),
        compiler_params=pltpu.CompilerParams(dimension_semantics=("parallel",)),
    )(boxes_pad, heat_flat)

    res = out[:R, :3 * K].reshape(R, 3, K)                   # [x | y | score] groups
    return jnp.transpose(res, (0, 2, 1))                     # (R, K, 3)


# -----------------------------------------------------------------------------
# keypoint_rcnn_inference + head module (glue).
# -----------------------------------------------------------------------------
def keypoint_rcnn_inference(pred_keypoint_logits, pred_instances):
    bboxes_flat = jnp.concatenate([inst["pred_boxes"] for inst in pred_instances], axis=0)
    keypoint_results = heatmaps_to_keypoints_pallas(pred_keypoint_logits, bboxes_flat)
    start = 0
    for inst in pred_instances:
        n = inst["pred_boxes"].shape[0]
        inst["pred_keypoints"] = keypoint_results[start:start + n]            # (Ni, K, 3)
        inst["pred_keypoint_heatmaps"] = pred_keypoint_logits[start:start + n]
        start += n
    return pred_instances


class BaseKeypointRCNNHeadPallas:
    def __init__(self, num_keypoints, in_channels, conv_dims=(16, 16),
                 loss_weight=1.0, loss_normalizer=1.0, key=None):
        self.num_keypoints = num_keypoints
        self.loss_weight = loss_weight
        assert loss_normalizer == "visible" or isinstance(loss_normalizer, float)
        self.loss_normalizer = loss_normalizer

        key = jax.random.PRNGKey(0) if key is None else key

        # Pre-pack GEMM-ready weights: transposed/reshaped, lane-padded to 128, bf16.
        self.conv_layers = []        # list of (w_mat (9C, Np) bf16, b (1, Np) f32, cout)
        cin = in_channels
        for cout in conv_dims:
            key, k1 = jax.random.split(key)
            w = jax.random.normal(k1, (cout, cin, 3, 3), jnp.float32) / math.sqrt(9 * cin)
            b = jnp.zeros((cout,), jnp.float32)
            w_mat = jnp.transpose(w, (2, 3, 1, 0)).reshape(9 * cin, cout)
            np_c = _round_up(cout, LANE)
            w_pad = jnp.zeros((9 * cin, np_c), jnp.float32).at[:, :cout].set(w_mat)
            b_pad = jnp.zeros((1, np_c), jnp.float32).at[0, :cout].set(b)
            self.conv_layers.append((w_pad.astype(jnp.bfloat16), b_pad, cout))
            cin = cout

        key, k2 = jax.random.split(key)
        wd = jax.random.normal(k2, (cin, num_keypoints, 4, 4), jnp.float32) / math.sqrt(16 * cin)
        bd = jnp.zeros((num_keypoints,), jnp.float32)
        np_k = _round_up(num_keypoints, LANE)
        self.deconv_phase_w = {}     # (py, px) -> (4C, Np_k) bf16
        for py in (0, 1):
            for px in (0, 1):
                rows = jnp.concatenate(
                    [wd[:, :, ky, kx] for ky in _PHASE_KY[py] for kx in _PHASE_KY[px]],
                    axis=0)                                   # (4*C, K)
                w_pad = jnp.zeros((4 * cin, np_k), jnp.float32).at[:, :num_keypoints].set(rows)
                self.deconv_phase_w[(py, px)] = w_pad.astype(jnp.bfloat16)
        self.deconv_b = jnp.zeros((1, np_k), jnp.float32).at[0, :num_keypoints].set(bd)

    def layers(self, x_nchw):
        x = jnp.transpose(x_nchw, (0, 2, 3, 1)).astype(jnp.bfloat16)    # NCHW -> NHWC bf16
        for w_mat, b_mat, cout in self.conv_layers:
            x = conv3x3_relu(x, w_mat, b_mat, cout)
        x = deconv4x4_s2(x, self.deconv_phase_w, self.deconv_b, self.num_keypoints)
        heat = jnp.transpose(x, (0, 3, 1, 2))                           # (R, K, 2H, 2W)
        return upsample2x_bilinear(heat)                                # (R, K, 4H, 4W) f32

    def forward(self, x, instances, training=False):
        x = self.layers(x)
        if training:
            # TODO(synk): keypoint_rcnn_loss (training path) not implemented here.
            raise NotImplementedError("training loss path not implemented")
        keypoint_rcnn_inference(x, instances)
        return instances


if __name__ == "__main__":
    key = jax.random.PRNGKey(0)
    k_x, k_head = jax.random.split(key)

    R, Cin, H, W = 2, 8, 8, 8          # 2 instances total (1 per image), 8-ch 8x8 ROI features
    num_keypoints = 4
    x = jax.random.normal(k_x, (R, Cin, H, W), jnp.float32)

    instances = [
        {"pred_boxes": jnp.array([[2.0, 3.0, 20.0, 25.0]], jnp.float32)},
        {"pred_boxes": jnp.array([[5.0, 1.0, 30.0, 18.0]], jnp.float32)},
    ]

    head = BaseKeypointRCNNHeadPallas(num_keypoints=num_keypoints, in_channels=Cin, key=k_head)
    out = head.forward(x, instances, training=False)

    for inst in out:
        jax.block_until_ready(inst["pred_keypoints"])
        jax.block_until_ready(inst["pred_keypoint_heatmaps"])
        assert inst["pred_keypoints"].shape == (1, num_keypoints, 3)
        assert inst["pred_keypoint_heatmaps"].shape == (1, num_keypoints, 4 * H, 4 * W)

    print("KERNEL_OK")
</pallas_src>

<mosaic_0001>
module attributes {stable_mosaic.version = 11 : i64} {
  func.func @_gemm_bias_act_kernel(%arg0: i32, %arg1: memref<128x72xbf16, #tpu.memory_space<vmem>>, %arg2: memref<72x128xbf16, #tpu.memory_space<vmem>>, %arg3: memref<1x128xf32, #tpu.memory_space<vmem>>, %arg4: memref<128x128xbf16, #tpu.memory_space<vmem>>) attributes {dimension_semantics = [#tpu.dimension_semantics<parallel>], iteration_bounds = array<i64: 1>, scalar_prefetch = 0 : i64, scratch_operands = 0 : i64, tpu.core_type = #tpu.core_type<tc>, window_params = [{transform_indices = @transform_0, window_bounds = array<i64: 128, 72>}, {pipeline_mode = #tpu.pipeline_mode<synchronous>, transform_indices = @transform_1, window_bounds = array<i64: 72, 128>}, {pipeline_mode = #tpu.pipeline_mode<synchronous>, transform_indices = @transform_2, window_bounds = array<i64: 1, 128>}, {transform_indices = @transform_3, window_bounds = array<i64: 128, 128>}]} {
    %c0 = arith.constant 0 : index
    %c0_0 = arith.constant 0 : index
    %0 = vector.load %arg1[%c0, %c0_0] : memref<128x72xbf16, #tpu.memory_space<vmem>>, vector<128x72xbf16>
    %c0_1 = arith.constant 0 : index
    %c0_2 = arith.constant 0 : index
    %1 = vector.load %arg2[%c0_1, %c0_2] : memref<72x128xbf16, #tpu.memory_space<vmem>>, vector<72x128xbf16>
    %cst = arith.constant dense<0.000000e+00> : vector<128x128xf32>
    %2 = tpu.matmul %0, %1, %cst {dimension_numbers = #tpu.dot_dimension_numbers<[1], [0], [0], [1], [0, 0, 1, 1], [], []>} : vector<128x72xbf16>, vector<72x128xbf16>, vector<128x128xf32> -> vector<128x128xf32>
    %c0_3 = arith.constant 0 : index
    %c0_4 = arith.constant 0 : index
    %3 = vector.load %arg3[%c0_3, %c0_4] : memref<1x128xf32, #tpu.memory_space<vmem>>, vector<1x128xf32>
    %4 = vector.broadcast %3 : vector<1x128xf32> to vector<128x128xf32>
    %5 = arith.addf %2, %4 : vector<128x128xf32>
    %cst_5 = arith.constant 0.000000e+00 : f32
    %6 = vector.broadcast %cst_5 : f32 to vector<128x128xf32>
    %7 = arith.maximumf %5, %6 : vector<128x128xf32>
    %8 = arith.truncf %7 : vector<128x128xf32> to vector<128x128xbf16>
    %c0_6 = arith.constant 0 : index
    %c0_7 = arith.constant 0 : index
    %9 = vector.load %arg4[%c0_6, %c0_7] : memref<128x128xbf16, #tpu.memory_space<vmem>>, vector<128x128xbf16>
    tpu.vector_store %arg4[%c0_6, %c0_7], %8 {strides = array<i32>} : memref<128x128xbf16, #tpu.memory_space<vmem>>, vector<128x128xbf16>,
    return
  }
  func.func @transform_0(%arg0: i32) -> (i32, i32) {
    %c0_i32 = arith.constant 0 : i32
    %c0_i32_0 = arith.constant 0 : i32
    return %arg0, %c0_i32 : i32, i32
  }
  func.func @transform_1(%arg0: i32) -> (i32, i32) {
    %c0_i32 = arith.constant 0 : i32
    %c0_i32_0 = arith.constant 0 : i32
    %c0_i32_1 = arith.constant 0 : i32
    return %c0_i32, %c0_i32_0 : i32, i32
  }
  func.func @transform_2(%arg0: i32) -> (i32, i32) {
    %c0_i32 = arith.constant 0 : i32
    %c0_i32_0 = arith.constant 0 : i32
    %c0_i32_1 = arith.constant 0 : i32
    return %c0_i32, %c0_i32_0 : i32, i32
  }
  func.func @transform_3(%arg0: i32) -> (i32, i32) {
    %c0_i32 = arith.constant 0 : i32
    %c0_i32_0 = arith.constant 0 : i32
    return %arg0, %c0_i32 : i32, i32
  }
}

</mosaic_0001>

<llo_original>
// kernel: tpu_custom_call.1
$region0: #{tpu_custom_call.1}
  #allocation0 [shape = 'u32[]', space=smem, size = 0x4, offset = 0x4, fixed_abs, tag = 'smem constant byte address 0x4 - core index']
  #allocation1 [shape = 'u32[144,128]{1,0:T(1,128)}', space=vmem, size = 0x12000, scoped, tag = 'internal scratch']
  %s0 = inlined_call_operand.vmem [shape: bf16[128,72], index: 0, kind: input, shape index: {}]
  %s1 = inlined_call_operand.vmem [shape: bf16[72,128], index: 1, kind: input, shape index: {}]
  %s2 = inlined_call_operand.vmem [shape: f32[1,128], index: 2, kind: input, shape index: {}]
  %s3 = inlined_call_operand.hbm [shape: bf16[128,128], index: 3, kind: output, shape index: {}]
  %s4 = sld [smem:[#allocation0]]
  $region22: #{tpu_custom_call.1} parent=0
    _
  %s6 = ssub.s32 1, %s4
  %s7 = scalar_select 0, %s6, %s4
  $region1: #{tpu_custom_call.1} parent=0
    #allocation2 [shape = 'u8[32768]{0}', space=vmem, size = 0x8000, scoped, tag = 'output window, operand 0, single buffered']
    #allocation3 [shape = 's32[1]{0}', space=sflag, size = 0x4, scoped, tag = 'scoped memory for tpu_custom_call.1']
    %8 = vsyncpa [#allocation3], 0
    // Predicated region
    $region2: #{tpu_custom_call.1} parent=1 // pred_check
      _
    $region3: #{tpu_custom_call.1} parent=1 // pred_check_branch
      %10 = sbr.rel (0) target = $region5
    $region4: #{tpu_custom_call.1} parent=1 // pred_region
      _
    $region5: #{tpu_custom_call.1} parent=1 // pred_fallthru
      _
    // Predicated region
    $region6: #{tpu_custom_call.1} parent=1 // pred_check
      _
    $region7: #{tpu_custom_call.1} parent=1 // pred_check_branch
      %12 = sbr.rel (0) target = $region9
    $region8: #{tpu_custom_call.1} parent=1 // pred_region
      _
    $region9: #{tpu_custom_call.1} parent=1 // pred_fallthru
      _
    // Predicated region
    $region10: #{tpu_custom_call.1} parent=1 // pred_check
      _
    $region11: #{tpu_custom_call.1} parent=1 // pred_check_branch
      %14 = sbr.rel (0) target = $region13
    $region12: #{tpu_custom_call.1} parent=1 // pred_region
      _
    $region13: #{tpu_custom_call.1} parent=1 // pred_fallthru
      _
    %v16 = vld [vmem:[%s0] sm:$0xf]
    %v17 = vld [vmem:[%s0 + $0x4] sm:$0xf]
    %v18 = vld [vmem:[%s0 + $0x8] sm:$0xf]
    %v19 = vld [vmem:[%s0 + $0xc] sm:$0xf]
    %v20 = vld [vmem:[%s0 + $0x10] sm:$0xf]
    %v21 = vld [vmem:[%s0 + $0x14] sm:$0xf]
    %v22 = vld [vmem:[%s0 + $0x18] sm:$0xf]
    %v23 = vld [vmem:[%s0 + $0x1c] sm:$0xf]
    %v24 = vld [vmem:[%s0 + $0x20] sm:$0xf]
    %v25 = vld [vmem:[%s0 + $0x24] sm:$0xf]
    %v26 = vld [vmem:[%s0 + $0x28] sm:$0xf]
    %v27 = vld [vmem:[%s0 + $0x2c] sm:$0xf]
    %v28 = vld [vmem:[%s0 + $0x30] sm:$0xf]
    %v29 = vld [vmem:[%s0 + $0x34] sm:$0xf]
    %v30 = vld [vmem:[%s0 + $0x38] sm:$0xf]
    %v31 = vld [vmem:[%s0 + $0x3c] sm:$0xf]
    %v32 = vld [vmem:[%s1] sm:$0xf]
    %v33 = vld [vmem:[%s1 + $0x4] sm:$0xf]
    %v34 = vld [vmem:[%s1 + $0x8] sm:$0xf]
    %v35 = vld [vmem:[%s1 + $0xc] sm:$0xf]
    %v36 = vld [vmem:[%s1 + $0x10] sm:$0xf]
    %v37 = vld [vmem:[%s1 + $0x14] sm:$0xf]
    %v38 = vld [vmem:[%s1 + $0x18] sm:$0xf]
    %v39 = vld [vmem:[%s1 + $0x1c] sm:$0xf]
    %v40 = vld [vmem:[%s1 + $0x20] sm:$0xf]
    %v41 = vld [vmem:[%s2] sm:$0x1]
    %v43 = vlaneseq
    %v44 = vshrl.u32 %v43, 7
    %v45 = vsub.s32 0, %v44
    %v46 = vrot.slane %v41, %v45
    %v64 = vunpack.c.l.b16 %v16
    %v65 = vunpack.c.l.b16 %v17
    %v66 = vunpack.c.l.b16 %v18
    %v67 = vunpack.c.l.b16 %v19
    %v68 = vunpack.c.l.b16 %v20
    %v69 = vunpack.c.l.b16 %v21
    %v70 = vunpack.c.l.b16 %v22
    %v71 = vunpack.c.l.b16 %v23
    %v72 = vunpack.c.l.b16 %v24
    %v73 = vunpack.c.l.b16 %v25
    %v74 = vunpack.c.l.b16 %v26
    %v75 = vunpack.c.l.b16 %v27
    %v76 = vunpack.c.l.b16 %v28
    %v77 = vunpack.c.l.b16 %v29
    %v78 = vunpack.c.l.b16 %v30
    %v79 = vunpack.c.l.b16 %v31
    %v80 = vpack.c.b16 %v65, %v64
    %v81 = vpack.c.b16 %v67, %v66
    %v82 = vpack.c.b16 %v69, %v68
    %v83 = vpack.c.b16 %v71, %v70
    %v84 = vpack.c.b16 %v73, %v72
    %v85 = vpack.c.b16 %v75, %v74
    %v86 = vpack.c.b16 %v77, %v76
    %v87 = vpack.c.b16 %v79, %v78
    %v97 = vunpack.c.l.b16 %v32
    %v98 = vunpack.c.l.b16 %v33
    %v99 = vunpack.c.l.b16 %v34
    %v100 = vunpack.c.l.b16 %v35
    %v101 = vunpack.c.l.b16 %v36
    %v102 = vunpack.c.l.b16 %v37
    %v103 = vunpack.c.l.b16 %v38
    %v104 = vunpack.c.l.b16 %v39
    %v105 = vunpack.c.l.b16 %v40
    %v106 = vpack.c.b16 %v98, %v97
    %v107 = vpack.c.b16 %v100, %v99
    %v108 = vpack.c.b16 %v102, %v101
    %v109 = vpack.c.b16 %v104, %v103
    %v110 = vpack.c.b16 %v105, %v105
    %vm115 = vcmask 588800
    %v117 = vsel %vm115, %v80, 0
    %v120 = vsel %vm115, %v81, 0
    %v123 = vsel %vm115, %v82, 0
    %v126 = vsel %vm115, %v83, 0
    %v129 = vsel %vm115, %v84, 0
    %v132 = vsel %vm115, %v85, 0
    %v135 = vsel %vm115, %v86, 0
    %v138 = vsel %vm115, %v87, 0
    %vm140 = vcmask 1043456
    %v142 = vsel %vm140, %v110, 0
    %144 = vmatprep.subr.bf16.mxu0 0
    %145 = vmatpush1.bf16.msra.mxu0 0
    %146 = vmatprep.subr.bf16.mxu0 0
    %147 = vmatpush1.bf16.msra.mxu0 0
    %148 = vmatprep.subr.bf16.mxu0 0
    %149 = vmatpush1.bf16.msra.mxu0 0
    %150 = vmatprep.subr.bf16.mxu0 0
    %151 = vmatpush1.bf16.msra.mxu0 %v142
    %152 = vmatprep.subr.bf16.mxu0 0
    %153 = vmatpush1.bf16.msra.mxu0 %v109
    %154 = vmatprep.subr.bf16.mxu0 0
    %155 = vmatpush1.bf16.msra.mxu0 %v108
    %156 = vmatprep.subr.bf16.mxu0 0
    %157 = vmatpush1.bf16.msra.mxu0 %v107
    %158 = vmatprep.subr.bf16.mxu0 0
    %159 = vmatpush1.bf16.msra.mxu0 %v106
    %160 = vmatprep.subr.bf16.mxu0 0
    %161 = vmatpush2.bf16.msra.mxu0 0
    %162 = vmatprep.subr.bf16.mxu0 0
    %163 = vmatpush2.bf16.msra.mxu0 0
    %164 = vmatprep.subr.bf16.mxu0 0
    %165 = vmatpush2.bf16.msra.mxu0 0
    %166 = vmatprep.subr.bf16.mxu0 0
    %167 = vmatpush2.bf16.msra.mxu0 0
    %168 = vmatprep.subr.bf16.mxu0 0
    %169 = vmatpush2.bf16.msra.mxu0 0
    %170 = vmatprep.subr.bf16.mxu0 0
    %171 = vmatpush2.bf16.msra.mxu0 0
    %172 = vmatprep.subr.bf16.mxu0 0
    %173 = vmatpush2.bf16.msra.mxu0 0
    %174 = vmatprep.subr.bf16.mxu0 0
    %175 = vmatpush2.bf16.msra.mxu0 0
    %176 = vmatprep.mubr.bf16.mxu0 0
    %177 = vmatmul.mubr.bf16.gmra.mxu0 %v117
    %v178 = vpop.f32.mrf.mxu0
    %v179 = vadd.f32 %v46, %v178
    %v180 = vpop.f32.mrf.mxu0
    %v181 = vpop.f32.mrf.mxu0
    %v182 = vadd.f32 %v46, %v181
    %v183 = vpop.f32.mrf.mxu0
    %184 = vmatprep.mubr.bf16.mxu0 0
    %185 = vmatmul.mubr.bf16.gmra.mxu0 %v120
    %v186 = vpop.f32.mrf.mxu0
    %v187 = vadd.f32 %v46, %v186
    %v188 = vpop.f32.mrf.mxu0
    %v189 = vpop.f32.mrf.mxu0
    %v190 = vadd.f32 %v46, %v189
    %v191 = vpop.f32.mrf.mxu0
    %192 = vmatprep.mubr.bf16.mxu0 0
    %193 = vmatmul.mubr.bf16.gmra.mxu0 %v123
    %v194 = vpop.f32.mrf.mxu0
    %v195 = vadd.f32 %v46, %v194
    %v196 = vpop.f32.mrf.mxu0
    %v197 = vpop.f32.mrf.mxu0
    %v198 = vadd.f32 %v46, %v197
    %v199 = vpop.f32.mrf.mxu0
    %200 = vmatprep.mubr.bf16.mxu0 0
    %201 = vmatmul.mubr.bf16.gmra.mxu0 %v126
    %v202 = vpop.f32.mrf.mxu0
    %v203 = vadd.f32 %v46, %v202
    %v204 = vpop.f32.mrf.mxu0
    %v205 = vpop.f32.mrf.mxu0
    %v206 = vadd.f32 %v46, %v205
    %v207 = vpop.f32.mrf.mxu0
    %208 = vmatprep.mubr.bf16.mxu0 0
    %209 = vmatmul.mubr.bf16.gmra.mxu0 %v129
    %v210 = vpop.f32.mrf.mxu0
    %v211 = vadd.f32 %v46, %v210
    %v212 = vpop.f32.mrf.mxu0
    %v213 = vpop.f32.mrf.mxu0
    %v214 = vadd.f32 %v46, %v213
    %v215 = vpop.f32.mrf.mxu0
    %216 = vmatprep.mubr.bf16.mxu0 0
    %217 = vmatmul.mubr.bf16.gmra.mxu0 %v132
    %v218 = vpop.f32.mrf.mxu0
    %v219 = vadd.f32 %v46, %v218
    %v220 = vpop.f32.mrf.mxu0
    %v221 = vpop.f32.mrf.mxu0
    %v222 = vadd.f32 %v46, %v221
    %v223 = vpop.f32.mrf.mxu0
    %224 = vmatprep.mubr.bf16.mxu0 0
    %225 = vmatmul.mubr.bf16.gmra.mxu0 %v135
    %v226 = vpop.f32.mrf.mxu0
    %v227 = vadd.f32 %v46, %v226
    %v228 = vpop.f32.mrf.mxu0
    %v229 = vpop.f32.mrf.mxu0
    %v230 = vadd.f32 %v46, %v229
    %v231 = vpop.f32.mrf.mxu0
    %232 = vmatprep.mubr.bf16.mxu0 0
    %233 = vmatmul.mubr.bf16.gmra.mxu0 %v138
    %v234 = vpop.f32.mrf.mxu0
    %v235 = vadd.f32 %v46, %v234
    %v236 = vpop.f32.mrf.mxu0
    %v237 = vpop.f32.mrf.mxu0
    %v238 = vadd.f32 %v46, %v237
    %v239 = vpop.f32.mrf.mxu0
    %240 = vdwg.mxu0
    %v241 = vmax.f32 %v179, 0.0
    %v242 = vmax.f32 %v182, 0.0
    %v243 = vmax.f32 %v187, 0.0
    %v244 = vmax.f32 %v190, 0.0
    %v245 = vmax.f32 %v195, 0.0
    %v246 = vmax.f32 %v198, 0.0
    %v247 = vmax.f32 %v203, 0.0
    %v248 = vmax.f32 %v206, 0.0
    %v249 = vmax.f32 %v211, 0.0
    %v250 = vmax.f32 %v214, 0.0
    %v251 = vmax.f32 %v219, 0.0
    %v252 = vmax.f32 %v222, 0.0
    %v253 = vmax.f32 %v227, 0.0
    %v254 = vmax.f32 %v230, 0.0
    %v255 = vmax.f32 %v235, 0.0
    %v256 = vmax.f32 %v238, 0.0
    %v257 = vpack.c.bf16 %v242, %v241
    %v258 = vpack.c.bf16 %v244, %v243
    %v259 = vpack.c.bf16 %v246, %v245
    %v260 = vpack.c.bf16 %v248, %v247
    %v261 = vpack.c.bf16 %v250, %v249
    %v262 = vpack.c.bf16 %v252, %v251
    %v263 = vpack.c.bf16 %v254, %v253
    %v264 = vpack.c.bf16 %v256, %v255
    %v273 = vunpack.c.l.b16 %v257
    %v274 = vunpack.c.h.b16 %v257
    %v275 = vunpack.c.l.b16 %v258
    %v276 = vunpack.c.h.b16 %v258
    %v277 = vunpack.c.l.b16 %v259
    %v278 = vunpack.c.h.b16 %v259
    %v279 = vunpack.c.l.b16 %v260
    %v280 = vunpack.c.h.b16 %v260
    %v281 = vunpack.c.l.b16 %v261
    %v282 = vunpack.c.h.b16 %v261
    %v283 = vunpack.c.l.b16 %v262
    %v284 = vunpack.c.h.b16 %v262
    %v285 = vunpack.c.l.b16 %v263
    %v286 = vunpack.c.h.b16 %v263
    %v287 = vunpack.c.l.b16 %v264
    %v288 = vunpack.c.h.b16 %v264
    %v289 = vpack.c.b16 %v273, %v273
    %v290 = vpack.c.b16 %v274, %v274
    %v291 = vpack.c.b16 %v275, %v275
    %v292 = vpack.c.b16 %v276, %v276
    %v293 = vpack.c.b16 %v277, %v277
    %v294 = vpack.c.b16 %v278, %v278
    %v295 = vpack.c.b16 %v279, %v279
    %v296 = vpack.c.b16 %v280, %v280
    %v297 = vpack.c.b16 %v281, %v281
    %v298 = vpack.c.b16 %v282, %v282
    %v299 = vpack.c.b16 %v283, %v283
    %v300 = vpack.c.b16 %v284, %v284
    %v301 = vpack.c.b16 %v285, %v285
    %v302 = vpack.c.b16 %v286, %v286
    %v303 = vpack.c.b16 %v287, %v287
    %v304 = vpack.c.b16 %v288, %v288
    %321 = vst [vmem:[#allocation2] sm:$0xf] %v289
    %322 = vst [vmem:[#allocation2 + $0x4] sm:$0xf] %v290
    %323 = vst [vmem:[#allocation2 + $0x8] sm:$0xf] %v291
    %324 = vst [vmem:[#allocation2 + $0xc] sm:$0xf] %v292
    %325 = vst [vmem:[#allocation2 + $0x10] sm:$0xf] %v293
    %326 = vst [vmem:[#allocation2 + $0x14] sm:$0xf] %v294
    %327 = vst [vmem:[#allocation2 + $0x18] sm:$0xf] %v295
    %328 = vst [vmem:[#allocation2 + $0x1c] sm:$0xf] %v296
    %329 = vst [vmem:[#allocation2 + $0x20] sm:$0xf] %v297
    %330 = vst [vmem:[#allocation2 + $0x24] sm:$0xf] %v298
    %331 = vst [vmem:[#allocation2 + $0x28] sm:$0xf] %v299
    %332 = vst [vmem:[#allocation2 + $0x2c] sm:$0xf] %v300
    %333 = vst [vmem:[#allocation2 + $0x30] sm:$0xf] %v301
    %334 = vst [vmem:[#allocation2 + $0x34] sm:$0xf] %v302
    %335 = vst [vmem:[#allocation2 + $0x38] sm:$0xf] %v303
    %336 = vst [vmem:[#allocation2 + $0x3c] sm:$0xf] %v304
    // Predicated region
    $region14: #{tpu_custom_call.1} parent=1 // pred_check
      _
    $region15: #{tpu_custom_call.1} parent=1 // pred_check_branch
      %338 = sbr.rel (0) target = $region17
    $region16: #{tpu_custom_call.1} parent=1 // pred_region
      %s340 = ssub.s32 1024, 1024
      %341 = vsyncadd [#allocation3], %s340
      %s342 = sshll.u32 [#allocation2], 4
      %s343 = int_to_ptr.vmem [resolvable:$true] %s342
      %348 = dma.vmem_to_hbm [thread:$0]  %s343, 1024, %s3, [#allocation3], 64, 64, 4
    $region17: #{tpu_custom_call.1} parent=1 // pred_fallthru
      _
    // Predicated region
    $region18: #{tpu_custom_call.1} parent=1 // pred_check
      _
    $region19: #{tpu_custom_call.1} parent=1 // pred_check_branch
      %350 = sbr.rel (0) target = $region21
    $region20: #{tpu_custom_call.1} parent=1 // pred_region
      %351 = dma.done [#allocation3], 1024
    $region21: #{tpu_custom_call.1} parent=1 // pred_fallthru
      _
    %352 = vsyncpa [#allocation3], 1

</llo_original>
